<compile_context>
chip_gen: v6e
topology: v6e:2x2x1
jax: 0.10.0
libtpu: 0.0.40
codegen_flags: <defaults>
</compile_context>

<pallas_src>
import jax
import jax.numpy as jnp
from jax.experimental import pallas as pl
from jax.experimental.pallas import tpu as pltpu

N_LAYERS = 13
LN_EPS = 1e-5


def _w2v2_kernel(w_ref, f_ref, o_ref, off_ref):
    """Per (row-tile, layer) grid-step body.

    w_ref   : SMEM (N_LAYERS,) float32   -- already-softmaxed layer weights
    f_ref   : VMEM (1, TT, H)            -- one layer's rows for this tile
    o_ref   : VMEM (TT, H) float32       -- weighted-sum accumulator / output
    off_ref : VMEM (TT, 1) float32       -- deferred per-row mean offset
    """
    layer = pl.program_id(1)

    @pl.when(layer == 0)
    def _():
        o_ref[...] = jnp.zeros_like(o_ref)
        off_ref[...] = jnp.zeros_like(off_ref)

    x = f_ref[0].astype(jnp.float32)                      # (TT, H), f32 math
    inv_h = 1.0 / x.shape[-1]
    s1 = jnp.sum(x, axis=-1, keepdims=True)               # (TT, 1)
    s2 = jnp.sum(x * x, axis=-1, keepdims=True)           # (TT, 1)
    mean = s1 * inv_h
    var = jnp.maximum(s2 * inv_h - mean * mean, 0.0)      # single-pass variance
    # Fold the softmaxed layer weight into the LayerNorm scale.
    scale = w_ref[layer] * jax.lax.rsqrt(var + LN_EPS)    # (TT, 1)

    o_ref[...] += scale * x                               # per-element work
    off_ref[...] += scale * mean                          # per-row work only

    @pl.when(layer == pl.num_programs(1) - 1)
    def _():
        o_ref[...] = o_ref[...] - off_ref[...]            # subtract offset once


def wav2vec2_weighted_sum(hidden_states, layer_weights, *, tt=1024):
    """hidden_states: [N_LAYERS, B, T, H] float32 or bfloat16
       layer_weights: [N_LAYERS] float32 (raw parameter; softmax applied here)
       returns:       [B, T, H] float32
    """
    n, b, t, h = hidden_states.shape
    assert n == N_LAYERS

    # Softmax of the 13 layer weights is scalar glue -> plain JAX.
    w_soft = jax.nn.softmax(layer_weights.astype(jnp.float32), axis=-1)

    # Fuse batch & time: [13, B, T, H] -> [13, M, H] (layout-preserving).
    m = b * t
    f = hidden_states.reshape(n, m, h)

    itemsize = jnp.dtype(f.dtype).itemsize
    sub = 16 if f.dtype == jnp.bfloat16 else 8

    # Sublane-aligned row tile; clamp so short inputs still give >= 2 row tiles
    # (lets the "parallel" axis shard across both TensorCores on v7x).
    tt_req = max(sub, (int(tt) // sub) * sub)
    tt_eff = min(tt_req, pl.cdiv(pl.cdiv(m, 2), sub) * sub)
    tt_eff = max(sub, tt_eff)

    # VMEM footprint: double-buffered input & output blocks, offset scratch,
    # and in-kernel f32 cast / x*x temporaries.  Cap at 48 MiB (v7x-safe).
    def footprint(rows):
        in_bytes = 2 * rows * h * itemsize        # double-buffered layer block
        out_bytes = 2 * rows * h * 4              # double-buffered f32 output block
        scratch = rows * 128 * 4                  # (rows, 1) offset, lane-padded
        temps = 2 * rows * h * 4                  # f32 cast + x*x temporaries
        return in_bytes + out_bytes + scratch + temps + (2 << 20)

    VMEM_CAP = 48 << 20
    while tt_eff > sub and footprint(tt_eff) > VMEM_CAP:
        tt_eff = max(sub, (tt_eff // 2 // sub) * sub)

    grid = (pl.cdiv(m, tt_eff), N_LAYERS)         # (row tiles, layers)
    vmem_limit = int(min(max(footprint(tt_eff), 32 << 20), VMEM_CAP))

    # Advisory cost: bandwidth-bound (13 reads + 1 write per output element).
    cost = pl.CostEstimate(
        flops=int(6 * N_LAYERS * m * h),
        transcendentals=int(N_LAYERS * m),
        bytes_accessed=int(N_LAYERS * m * h * itemsize + m * h * 4),
    )

    out = pl.pallas_call(
        _w2v2_kernel,
        out_shape=jax.ShapeDtypeStruct((m, h), jnp.float32),
        grid=grid,
        in_specs=[
            pl.BlockSpec(memory_space=pltpu.MemorySpace.SMEM),          # weights
            pl.BlockSpec((1, tt_eff, h), lambda i, l: (l, i, 0)),       # one layer tile
        ],
        out_specs=pl.BlockSpec((tt_eff, h), lambda i, l: (i, 0)),       # accumulator
        scratch_shapes=[pltpu.VMEM((tt_eff, 1), jnp.float32)],          # row offsets
        compiler_params=pltpu.CompilerParams(
            dimension_semantics=("parallel", "arbitrary"),
            vmem_limit_bytes=vmem_limit,
        ),
        cost_estimate=cost,
    )(w_soft, f)

    return out.reshape(b, t, h)


def _reference(hidden_states, layer_weights):
    f = hidden_states.astype(jnp.float32)
    mean = jnp.mean(f, axis=-1, keepdims=True)
    var = jnp.mean((f - mean) ** 2, axis=-1, keepdims=True)
    normed = (f - mean) / jnp.sqrt(var + LN_EPS)
    w = jax.nn.softmax(layer_weights.astype(jnp.float32), axis=-1)
    return jnp.einsum("n,nbth->bth", w, normed)


if __name__ == "__main__":
    key = jax.random.PRNGKey(0)
    k1, _ = jax.random.split(key)

    # Small synthetic shapes: 13 layers, batch=2, 25 frames (B*T=50 is not a
    # multiple of the row tile -> exercises the masked partial-block path and
    # still yields 2 row tiles for the parallel axis), hidden=128 (lane-dense).
    B, T, H = 2, 25, 128
    hidden_states = jax.random.normal(k1, (N_LAYERS, B, T, H), dtype=jnp.float32)

    # Module __init__: self.weights = nn.Parameter(torch.ones(13) / 13)
    layer_weights = jnp.ones((N_LAYERS,), dtype=jnp.float32) / N_LAYERS

    out = wav2vec2_weighted_sum(hidden_states, layer_weights)
    out = jax.block_until_ready(out)

    ref = _reference(hidden_states, layer_weights)
    assert out.shape == (B, T, H)
    assert jnp.allclose(out, ref, atol=2e-4, rtol=1e-4)

    # bf16 input path (halves HBM traffic; f32 math inside the kernel).
    out_bf16 = wav2vec2_weighted_sum(hidden_states.astype(jnp.bfloat16), layer_weights)
    out_bf16 = jax.block_until_ready(out_bf16)
    assert jnp.allclose(out_bf16, ref, atol=5e-2, rtol=5e-2)

    print("KERNEL_OK")
</pallas_src>

<mosaic_0001>
module attributes {stable_mosaic.version = 11 : i64} {
  func.func @_w2v2_kernel(%arg0: i32, %arg1: i32, %arg2: memref<13xf32, #tpu.memory_space<smem>>, %arg3: memref<1x32x128xf32, #tpu.memory_space<vmem>>, %arg4: memref<32x128xf32, #tpu.memory_space<vmem>>, %arg5: memref<32x1xf32, #tpu.memory_space<vmem>>) attributes {dimension_semantics = [#tpu.dimension_semantics<parallel>, #tpu.dimension_semantics<arbitrary>], iteration_bounds = array<i64: 2, 13>, scalar_prefetch = 0 : i64, scratch_operands = 1 : i64, tpu.core_type = #tpu.core_type<tc>, window_params = [{transform_indices = @transform_0, window_bounds = array<i64: 13>}, {transform_indices = @transform_1, window_bounds = array<i64: 1, 32, 128>}, {transform_indices = @transform_2, window_bounds = array<i64: 32, 128>}]} {
    %c0_i32 = arith.constant 0 : i32
    %0 = arith.cmpi eq, %arg1, %c0_i32 : i32
    %1 = arith.extui %0 : i1 to i32
    %c0_i32_0 = arith.constant 0 : i32
    %2 = arith.cmpi ne, %1, %c0_i32_0 : i32
    scf.if %2 {
      %cst_17 = arith.constant 0.000000e+00 : f32
      %37 = vector.broadcast %cst_17 : f32 to vector<32x128xf32>
      %c0_18 = arith.constant 0 : index
      %c0_19 = arith.constant 0 : index
      %38 = vector.load %arg4[%c0_18, %c0_19] : memref<32x128xf32, #tpu.memory_space<vmem>>, vector<32x128xf32>
      tpu.vector_store %arg4[%c0_18, %c0_19], %37 {strides = array<i32>} : memref<32x128xf32, #tpu.memory_space<vmem>>, vector<32x128xf32>,
      %cst_20 = arith.constant 0.000000e+00 : f32
      %39 = vector.broadcast %cst_20 : f32 to vector<32x1xf32>
      %c0_21 = arith.constant 0 : index
      %c0_22 = arith.constant 0 : index
      %40 = vector.load %arg5[%c0_21, %c0_22] : memref<32x1xf32, #tpu.memory_space<vmem>>, vector<32x1xf32>
      tpu.vector_store %arg5[%c0_21, %c0_22], %39 {strides = array<i32>} : memref<32x1xf32, #tpu.memory_space<vmem>>, vector<32x1xf32>,
    } else {
    }
    %c0 = arith.constant 0 : index
    %c0_1 = arith.constant 0 : index
    %c0_2 = arith.constant 0 : index
    %3 = vector.load %arg3[%c0, %c0_1, %c0_2] : memref<1x32x128xf32, #tpu.memory_space<vmem>>, vector<1x32x128xf32>
    %4 = vector.shape_cast %3 : vector<1x32x128xf32> to vector<32x128xf32>
    %cst = arith.constant dense<0.000000e+00> : vector<32xf32>
    %5 = vector.multi_reduction <add>, %4, %cst [1] : vector<32x128xf32> to vector<32xf32>
    %6 = vector.shape_cast %5 : vector<32xf32> to vector<32x1xf32>
    %7 = arith.mulf %4, %4 : vector<32x128xf32>
    %cst_3 = arith.constant dense<0.000000e+00> : vector<32xf32>
    %8 = vector.multi_reduction <add>, %7, %cst_3 [1] : vector<32x128xf32> to vector<32xf32>
    %9 = vector.shape_cast %8 : vector<32xf32> to vector<32x1xf32>
    %cst_4 = arith.constant 7.812500e-03 : f32
    %10 = vector.broadcast %cst_4 : f32 to vector<32x1xf32>
    %11 = arith.mulf %6, %10 : vector<32x1xf32>
    %cst_5 = arith.constant 7.812500e-03 : f32
    %12 = vector.broadcast %cst_5 : f32 to vector<32x1xf32>
    %13 = arith.mulf %9, %12 : vector<32x1xf32>
    %14 = arith.mulf %11, %11 : vector<32x1xf32>
    %15 = arith.subf %13, %14 : vector<32x1xf32>
    %cst_6 = arith.constant 0.000000e+00 : f32
    %16 = vector.broadcast %cst_6 : f32 to vector<32x1xf32>
    %17 = arith.maximumf %15, %16 : vector<32x1xf32>
    %18 = arith.index_cast %arg1 : i32 to index
    %19 = memref.load %arg2[%18] : memref<13xf32, #tpu.memory_space<smem>>
    %cst_7 = arith.constant 9.99999974E-6 : f32
    %20 = vector.broadcast %cst_7 : f32 to vector<32x1xf32>
    %21 = arith.addf %17, %20 : vector<32x1xf32>
    %22 = math.rsqrt %21 : vector<32x1xf32>
    %23 = vector.broadcast %19 : f32 to vector<32x1xf32>
    %24 = arith.mulf %23, %22 : vector<32x1xf32>
    %c0_8 = arith.constant 0 : index
    %c0_9 = arith.constant 0 : index
    %25 = vector.load %arg4[%c0_8, %c0_9] : memref<32x128xf32, #tpu.memory_space<vmem>>, vector<32x128xf32>
    %26 = vector.broadcast %24 : vector<32x1xf32> to vector<32x128xf32>
    %27 = arith.mulf %26, %4 : vector<32x128xf32>
    %28 = arith.addf %25, %27 : vector<32x128xf32>
    %c0_10 = arith.constant 0 : index
    %c0_11 = arith.constant 0 : index
    %29 = vector.load %arg4[%c0_10, %c0_11] : memref<32x128xf32, #tpu.memory_space<vmem>>, vector<32x128xf32>
    tpu.vector_store %arg4[%c0_10, %c0_11], %28 {strides = array<i32>} : memref<32x128xf32, #tpu.memory_space<vmem>>, vector<32x128xf32>,
    %c0_12 = arith.constant 0 : index
    %c0_13 = arith.constant 0 : index
    %30 = vector.load %arg5[%c0_12, %c0_13] : memref<32x1xf32, #tpu.memory_space<vmem>>, vector<32x1xf32>
    %31 = arith.mulf %24, %11 : vector<32x1xf32>
    %32 = arith.addf %30, %31 : vector<32x1xf32>
    %c0_14 = arith.constant 0 : index
    %c0_15 = arith.constant 0 : index
    %33 = vector.load %arg5[%c0_14, %c0_15] : memref<32x1xf32, #tpu.memory_space<vmem>>, vector<32x1xf32>
    tpu.vector_store %arg5[%c0_14, %c0_15], %32 {strides = array<i32>} : memref<32x1xf32, #tpu.memory_space<vmem>>, vector<32x1xf32>,
    %c12_i32 = arith.constant 12 : i32
    %34 = arith.cmpi eq, %arg1, %c12_i32 : i32
    %35 = arith.extui %34 : i1 to i32
    %c0_i32_16 = arith.constant 0 : i32
    %36 = arith.cmpi ne, %35, %c0_i32_16 : i32
    scf.if %36 {
      %c0_17 = arith.constant 0 : index
      %c0_18 = arith.constant 0 : index
      %37 = vector.load %arg4[%c0_17, %c0_18] : memref<32x128xf32, #tpu.memory_space<vmem>>, vector<32x128xf32>
      %c0_19 = arith.constant 0 : index
      %c0_20 = arith.constant 0 : index
      %38 = vector.load %arg5[%c0_19, %c0_20] : memref<32x1xf32, #tpu.memory_space<vmem>>, vector<32x1xf32>
      %39 = vector.broadcast %38 : vector<32x1xf32> to vector<32x128xf32>
      %40 = arith.subf %37, %39 : vector<32x128xf32>
      %c0_21 = arith.constant 0 : index
      %c0_22 = arith.constant 0 : index
      %41 = vector.load %arg4[%c0_21, %c0_22] : memref<32x128xf32, #tpu.memory_space<vmem>>, vector<32x128xf32>
      tpu.vector_store %arg4[%c0_21, %c0_22], %40 {strides = array<i32>} : memref<32x128xf32, #tpu.memory_space<vmem>>, vector<32x128xf32>,
    } else {
    }
    return
  }
  func.func @transform_0(%arg0: i32, %arg1: i32) -> i32 {
    %c0_i32 = arith.constant 0 : i32
    %c0_i32_0 = arith.constant 0 : i32
    return %c0_i32 : i32
  }
  func.func @transform_1(%arg0: i32, %arg1: i32) -> (i32, i32, i32) {
    %c0_i32 = arith.constant 0 : i32
    %c0_i32_0 = arith.constant 0 : i32
    return %arg1, %arg0, %c0_i32 : i32, i32, i32
  }
  func.func @transform_2(%arg0: i32, %arg1: i32) -> (i32, i32) {
    %c0_i32 = arith.constant 0 : i32
    %c0_i32_0 = arith.constant 0 : i32
    return %arg0, %c0_i32 : i32, i32
  }
}

</mosaic_0001>

<llo_original>
// kernel: tpu_custom_call.1
$region0: #{tpu_custom_call.1}
  #allocation0 [shape = 'u32[]', space=smem, size = 0x4, offset = 0x4, fixed_abs, tag = 'smem constant byte address 0x4 - core index']
  #allocation1 [shape = 'u32[144,128]{1,0:T(1,128)}', space=vmem, size = 0x12000, scoped, tag = 'internal scratch']
  #allocation2 [shape = 'f32[32,1]{1,0:T(8,128)}', space=vmem, size = 0x4000, scoped, tag = 'scratch operand']
  %s0 = inlined_call_operand.hbm [shape: f32[13], index: 0, kind: input, shape index: {}]
  %s1 = inlined_call_operand.hbm [shape: f32[13,50,128], index: 1, kind: input, shape index: {}]
  %s2 = inlined_call_operand.hbm [shape: f32[50,128], index: 2, kind: output, shape index: {}]
  %s3 = sld [smem:[#allocation0]]
  $region57: #{tpu_custom_call.1} parent=0
    _
  %s5 = ssub.s32 1, %s3
  %s6 = scalar_select 0, %s5, %s3
  $region1: #{tpu_custom_call.1} parent=0
    #allocation3 [shape = 'u8[512]{0}', space=smem, size = 0x200, scoped, tag = 'input window, operand 0, single buffered']
    #allocation4 [shape = 's32[2]{0}', space=sflag, size = 0x8, scoped, tag = 'scoped memory for tpu_custom_call.1']
    #allocation5 [shape = 's32[2]{0}', space=sflag, size = 0x8, scoped, tag = 'scoped memory for tpu_custom_call.1']
    #allocation6 [shape = 's32[2]{0}', space=sflag, size = 0x8, scoped, tag = 'scoped memory for tpu_custom_call.1']
    #allocation7 [shape = 'u8[32768]{0}', space=vmem, size = 0x8000, scoped, tag = 'input window, operand 1']
    #allocation8 [shape = 'u8[32768]{0}', space=vmem, size = 0x8000, scoped, tag = 'output window, operand 0']
    %7 = vsyncpa [#allocation6], 0
    %8 = vsyncpa [#allocation4], 0
    %s9 = scalar_lea.sflag [#allocation4], 1
    %10 = vsyncpa %s9, 0
    %11 = vsyncpa [#allocation5], 0
    %s12 = scalar_lea.sflag [#allocation5], 1
    %13 = vsyncpa %s12, 0
    loop: start=0, step=1, limit=28
    $region2: #{tpu_custom_call.1} parent=1 // loop_pre_header
      _
    $region3: #{tpu_custom_call.1} parent=1 // loop_header
      %s15 = sphi 0, %s19
      %p16 = scmp.ge.s32.totalorder %s15, 28
      %s22 = sphi 0, %s34
      %s23 = sphi 0, %s30
      %s24 = sphi 0, %s22
      %s25 = sphi 0, %s23
      %s26 = sphi 0, %s24
      %s27 = sphi 0, %s25
      %s35 = sphi 0, %s35
      %s37 = sphi 0, %s35
      %s38 = sphi 0, %s37
      %s52 = sphi 0, %s38
      %s60 = sphi 0, %s62
      %s63 = sphi 0, %s60
      %s64 = sphi 0, %s63
      %s80 = sphi 0, %s64
      %s86 = sphi 0, %s88
      %s89 = sphi 0, %s86
      %s90 = sphi 0, %s89
      %s106 = sphi 0, %s90
    $region4: #{tpu_custom_call.1} parent=1 // loop_header_branch
      %18 = sbr.rel (%p16) target = $region8
    $region5: #{tpu_custom_call.1} parent=1 // loop_body
      %s20 = ssub.s32 %s15, 1
      %s21 = ssub.s32 %s15, 2
      %s28 = sadd.s32 1, %s23
      %p29 = scmp.ge.s32.totalorder %s28, 13
      %s30 = scalar_select %p29, 0, %s28
      %s31 = sadd.s32 1, %s22
      %s32 = scalar_select %p29, %s31, %s22
      %p33 = scmp.ge.s32.totalorder %s32, 2
      %s34 = scalar_select %p33, 0, %s32
      %s36 = sadd.s32 %s35, 1
      %p39 = scmp.eq.s32.totalorder %s15, 25
      %p40 = scmp.ne.s32.totalorder %s35, %s37
      %p41 = scmp.eq.s32.totalorder %s15, 0
      %p42 = por %p40, %p41
      %p43 = scmp.ne.s32.totalorder %s35, %s37
      %p44 = scmp.eq.s32.totalorder %s20, 25
      %p45 = por %p43, %p44
      %p46 = scmp.ne.s32.totalorder %s37, %s38
      %p47 = scmp.eq.s32.totalorder %s20, 0
      %p48 = por %p46, %p47
      %p49 = scmp.ne.s32.totalorder %s37, %s38
      %p50 = scmp.eq.s32.totalorder %s21, 25
      %p51 = por %p49, %p50
      %p53 = scmp.ne.s32.totalorder %s38, %s52
      %p54 = scmp.eq.s32.totalorder %s21, 0
      %p55 = por %p53, %p54
      %s56 = ssub.s32 %s23, %s30
      %s57 = ssub.s32 %s22, %s34
      %s58 = sor.u32 %s56, %s57
      %p59 = scmp.eq.s32.totalorder %s58, 0
      %s61 = sadd.s32 %s60, 1
      %s62 = scalar_select %p59, %s60, %s61
      %p65 = pneg %p59
      %p66 = scmp.eq.s32.totalorder %s15, 25
      %p67 = por %p65, %p66
      %p68 = scmp.ne.s32.totalorder %s60, %s63
      %p69 = scmp.eq.s32.totalorder %s15, 0
      %p70 = por %p68, %p69
      %p71 = scmp.ne.s32.totalorder %s60, %s63
      %p72 = scmp.eq.s32.totalorder %s20, 25
      %p73 = por %p71, %p72
      %p74 = scmp.ne.s32.totalorder %s63, %s64
      %p75 = scmp.eq.s32.totalorder %s20, 0
      %p76 = por %p74, %p75
      %p77 = scmp.ne.s32.totalorder %s63, %s64
      %p78 = scmp.eq.s32.totalorder %s21, 25
      %p79 = por %p77, %p78
      %p81 = scmp.ne.s32.totalorder %s64, %s80
      %p82 = scmp.eq.s32.totalorder %s21, 0
      %p83 = por %p81, %p82
      %s84 = ssub.s32 %s22, %s34
      %p85 = scmp.eq.s32.totalorder %s84, 0
      %s87 = sadd.s32 %s86, 1
      %s88 = scalar_select %p85, %s86, %s87
      %p91 = pneg %p85
      %p92 = scmp.eq.s32.totalorder %s15, 25
      %p93 = por %p91, %p92
      %p94 = scmp.ne.s32.totalorder %s86, %s89
      %p95 = scmp.eq.s32.totalorder %s15, 0
      %p96 = por %p94, %p95
      %p97 = scmp.ne.s32.totalorder %s86, %s89
      %p98 = scmp.eq.s32.totalorder %s20, 25
      %p99 = por %p97, %p98
      %p100 = scmp.ne.s32.totalorder %s89, %s90
      %p101 = scmp.eq.s32.totalorder %s20, 0
      %p102 = por %p100, %p101
      %p103 = scmp.ne.s32.totalorder %s89, %s90
      %p104 = scmp.eq.s32.totalorder %s21, 25
      %p105 = por %p103, %p104
      %p107 = scmp.ne.s32.totalorder %s90, %s106
      %p108 = scmp.eq.s32.totalorder %s21, 0
      %p109 = por %p107, %p108
      %p110 = scmp.le.s32.totalorder 1, %s15
      %p111 = scmp.lt.s32.totalorder %s15, 27
      %p112 = pnand %p110, %p111
      %p113 = pneg %p112
      // Predicated region
      $region9: #{tpu_custom_call.1} parent=5 // pred_check
        _
      $region10: #{tpu_custom_call.1} parent=5 // pred_check_branch
        %115 = sbr.rel (%p112) target = $region12
      $region11: #{tpu_custom_call.1} parent=5 // pred_region
        %s116 = ssub.s32 %s15, 1
        // Predicated region
        $region13: #{tpu_custom_call.1} parent=11 // pred_check
          %p117 = pneg %p48
        $region14: #{tpu_custom_call.1} parent=11 // pred_check_branch
          %119 = sbr.rel (%p117) target = $region16
        $region15: #{tpu_custom_call.1} parent=11 // pred_region
          %s121 = ssub.s32 16, 16
          %122 = vsyncadd [#allocation6], %s121
          %125 = dma.hbm_to_smem %s0, 16, [#allocation3], [#allocation6]
        $region16: #{tpu_custom_call.1} parent=11 // pred_fallthru
          _
      $region12: #{tpu_custom_call.1} parent=5 // pred_fallthru
        _
      %p126 = scmp.lt.s32.totalorder %s15, 26
      // Predicated region
      $region17: #{tpu_custom_call.1} parent=5 // pred_check
        %p127 = pneg %p126
      $region18: #{tpu_custom_call.1} parent=5 // pred_check_branch
        %129 = sbr.rel (%p127) target = $region20
      $region19: #{tpu_custom_call.1} parent=5 // pred_region
        // Predicated region
        $region21: #{tpu_custom_call.1} parent=19 // pred_check
          %p130 = pneg %p70
        $region22: #{tpu_custom_call.1} parent=19 // pred_check_branch
          %132 = sbr.rel (%p130) target = $region24
        $region23: #{tpu_custom_call.1} parent=19 // pred_region
          %s133 = sand.u32 %s60, 1
          %s134 = scalar_lea.sflag [#allocation4], %s133
          %s135 = sand.u32 %s60, 1
          %s136 = smul.addr %s135, 32
          %s137 = scalar_lea.vmem [#allocation7], %s136
          %s138 = smul.u32 4, %s22
          %s139 = ssub.s32 7, %s138
          %p140 = scmp.lt.s32.totalorder %s139, 4
          %s141 = scalar_select %p140, %s139, 4
          %s142 = smul.u32 128, %s141
          %s144 = ssub.s32 512, %s142
          %145 = vsyncadd %s134, %s144
          %p146 = scmp.ne.s32.totalorder 0, %s142
          %s147 = smul.addr %s23, 7
          %s148 = sadd.s32 %s138, %s147
          %s149 = smul.addr %s148, 128
          %s150 = scalar_lea.hbm %s1, %s149
          %s151 = smul.u32 8, %s141
          %s152 = sshll.u32 %s137, 4
          %s153 = int_to_ptr.vmem [resolvable:$true] %s152
          %s154 = sshll.u32 %s151, 4
          %158 = dma.hbm_to_vmem [thread:$0]  (%p146), %s150, %s154, %s153, %s134, 128, 128, 8
        $region24: #{tpu_custom_call.1} parent=19 // pred_fallthru
          _
      $region20: #{tpu_custom_call.1} parent=5 // pred_fallthru
        _
      %p159 = scmp.le.s32.totalorder 1, %s15
      %p160 = scmp.lt.s32.totalorder %s15, 27
      %p161 = pnand %p159, %p160
      %p162 = pneg %p161
      // Predicated region
      $region25: #{tpu_custom_call.1} parent=5 // pred_check
        _
      $region26: #{tpu_custom_call.1} parent=5 // pred_check_branch
        %164 = sbr.rel (%p161) target = $region28
      $region27: #{tpu_custom_call.1} parent=5 // pred_region
        %s165 = ssub.s32 %s15, 1
        // Predicated region
        $region29: #{tpu_custom_call.1} parent=27 // pred_check
          %p166 = pneg %p48
        $region30: #{tpu_custom_call.1} parent=27 // pred_check_branch
          %168 = sbr.rel (%p166) target = $region32
        $region31: #{tpu_custom_call.1} parent=27 // pred_region
          %169 = dma.done [#allocation6], 16
        $region32: #{tpu_custom_call.1} parent=27 // pred_fallthru
          _
        %s170 = sand.u32 %s63, 1
        %s171 = scalar_lea.sflag [#allocation4], %s170
        %s172 = sand.u32 %s63, 1
        %s173 = smul.addr %s172, 32
        %s174 = scalar_lea.vmem [#allocation7], %s173
        // Predicated region
        $region33: #{tpu_custom_call.1} parent=27 // pred_check
          %p175 = pneg %p76
        $region34: #{tpu_custom_call.1} parent=27 // pred_check_branch
          %177 = sbr.rel (%p175) target = $region36
        $region35: #{tpu_custom_call.1} parent=27 // pred_region
          %178 = dma.done %s171, 512
        $region36: #{tpu_custom_call.1} parent=27 // pred_fallthru
          _
        %179 = sfence
        %p180 = pneg %p48
        %p181 = pneg %p45
        %s182 = sand.u32 %s63, 1
        %s183 = scalar_lea.sflag [#allocation4], %s182
        %s184 = sand.u32 %s63, 1
        %s185 = smul.addr %s184, 32
        %s186 = scalar_lea.vmem [#allocation7], %s185
        %p187 = pneg %p76
        %p188 = pneg %p73
        %p189 = pneg %p102
        %p190 = pneg %p99
        %s191 = sand.u32 %s89, 1
        %s192 = scalar_lea.sflag [#allocation5], %s191
        %s193 = sand.u32 %s89, 1
        %s194 = smul.addr %s193, 32
        %s195 = scalar_lea.vmem [#allocation8], %s194
        %s196 = smul.u32 4, %s24
        %s197 = ssub.s32 7, %s196
        %p198 = scmp.lt.s32.totalorder %s197, 4
        %s199 = scalar_select %p198, %s197, 4
        %s200 = smul.u32 128, %s199
        %s201 = smul.u32 4, %s24
        %s202 = ssub.s32 7, %s201
        %p203 = scmp.lt.s32.totalorder %s202, 4
        %s204 = scalar_select %p203, %s202, 4
        %s205 = smul.u32 128, %s204
        %p206 = scmp.eq.s32.totalorder %s25, 0
        // Predicated region
        $region37: #{tpu_custom_call.1} parent=27 // pred_check
          %p207 = pneg %p206
        $region38: #{tpu_custom_call.1} parent=27 // pred_check_branch
          %209 = sbr.rel (%p207) target = $region40
        $region39: #{tpu_custom_call.1} parent=27 // pred_region
          %210 = vst [vmem:[%s195] sm:$0xff] 0.0
          %211 = vst [vmem:[%s195 + $0x8] sm:$0xff] 0.0
          %212 = vst [vmem:[%s195 + $0x10] sm:$0xff] 0.0
          %213 = vst [vmem:[%s195 + $0x18] sm:$0xff] 0.0
          %vm214 = vcmask 7168
          %215 = vst.msk [vmem:[#allocation2] sm:$0xff] %vm214, 0.0
          %216 = vst.msk [vmem:[#allocation2 + $0x8] sm:$0xff] %vm214, 0.0
          %217 = vst.msk [vmem:[#allocation2 + $0x10] sm:$0xff] %vm214, 0.0
          %218 = vst.msk [vmem:[#allocation2 + $0x18] sm:$0xff] %vm214, 0.0
        $region40: #{tpu_custom_call.1} parent=27 // pred_fallthru
          _
        %v219 = vld [vmem:[%s174] sm:$0xff]
        %v220 = vld [vmem:[%s174 + $0x8] sm:$0xff]
        %v221 = vld [vmem:[%s174 + $0x10] sm:$0xff]
        %v222 = vld [vmem:[%s174 + $0x18] sm:$0xff]
        %223 = vadd.xlane.f32.xlu0 %v219
        %v224 = vpop.xlane.xlu0 %223
        %225 = vadd.xlane.f32.xlu0 %v220
        %v226 = vpop.xlane.xlu0 %225
        %227 = vadd.xlane.f32.xlu0 %v221
        %v228 = vpop.xlane.xlu0 %227
        %229 = vadd.xlane.f32.xlu0 %v222
        %v230 = vpop.xlane.xlu0 %229
        %v231 = vmul.f32 %v219, %v219
        %v232 = vmul.f32 %v220, %v220
        %v233 = vmul.f32 %v221, %v221
        %v234 = vmul.f32 %v222, %v222
        %235 = vadd.xlane.f32.xlu0 %v231
        %v236 = vpop.xlane.xlu0 %235
        %237 = vadd.xlane.f32.xlu0 %v232
        %v238 = vpop.xlane.xlu0 %237
        %239 = vadd.xlane.f32.xlu0 %v233
        %v240 = vpop.xlane.xlu0 %239
        %241 = vadd.xlane.f32.xlu0 %v234
        %v242 = vpop.xlane.xlu0 %241
        %v243 = vmul.f32 %v224, 0.0078125
        %v244 = vmul.f32 %v226, 0.0078125
        %v245 = vmul.f32 %v228, 0.0078125
        %v246 = vmul.f32 %v230, 0.0078125
        %v247 = vmul.f32 %v236, 0.0078125
        %v248 = vmul.f32 %v238, 0.0078125
        %v249 = vmul.f32 %v240, 0.0078125
        %v250 = vmul.f32 %v242, 0.0078125
        %v251 = vmul.f32 %v243, %v243
        %v252 = vmul.f32 %v244, %v244
        %v253 = vmul.f32 %v245, %v245
        %v254 = vmul.f32 %v246, %v246
        %v255 = vsub.f32 %v247, %v251
        %v256 = vsub.f32 %v248, %v252
        %v257 = vsub.f32 %v249, %v253
        %v258 = vsub.f32 %v250, %v254
        %v259 = vmax.f32 %v255, 0.0
        %v260 = vmax.f32 %v256, 0.0
        %v261 = vmax.f32 %v257, 0.0
        %v262 = vmax.f32 %v258, 0.0
        %s263 = sld [smem:[#allocation3 + %s25]]
        %v264 = vadd.f32 %v259, 1e-05
        %v265 = vadd.f32 %v260, 1e-05
        %v266 = vadd.f32 %v261, 1e-05
        %v267 = vadd.f32 %v262, 1e-05
        %v268 = vrsqrt.pop %v264
        %v269 = vrsqrt.pop %v265
        %v270 = vrsqrt.pop %v266
        %v271 = vrsqrt.pop %v267
        %v272 = vstv %s263
        %v273 = vmul.f32 %v272, %v268
        %v274 = vmul.f32 %v272, %v269
        %v275 = vmul.f32 %v272, %v270
        %v276 = vmul.f32 %v272, %v271
        %v277 = vld [vmem:[%s195] sm:$0xff]
        %v278 = vld [vmem:[%s195 + $0x8] sm:$0xff]
        %v279 = vld [vmem:[%s195 + $0x10] sm:$0xff]
        %v280 = vld [vmem:[%s195 + $0x18] sm:$0xff]
        %v281 = vmul.f32 %v273, %v219
        %v282 = vmul.f32 %v274, %v220
        %v283 = vmul.f32 %v275, %v221
        %v284 = vmul.f32 %v276, %v222
        %v285 = vadd.f32 %v277, %v281
        %v286 = vadd.f32 %v278, %v282
        %v287 = vadd.f32 %v279, %v283
        %v288 = vadd.f32 %v280, %v284
        %289 = vst [vmem:[%s195] sm:$0xff] %v285
        %290 = vst [vmem:[%s195 + $0x8] sm:$0xff] %v286
        %291 = vst [vmem:[%s195 + $0x10] sm:$0xff] %v287
        %292 = vst [vmem:[%s195 + $0x18] sm:$0xff] %v288
        %v293 = vld [vmem:[#allocation2] sm:$0xff]
        %v294 = vld [vmem:[#allocation2 + $0x8] sm:$0xff]
        %v295 = vld [vmem:[#allocation2 + $0x10] sm:$0xff]
        %v296 = vld [vmem:[#allocation2 + $0x18] sm:$0xff]
        %v297 = vmul.f32 %v273, %v243
        %v298 = vmul.f32 %v274, %v244
        %v299 = vmul.f32 %v275, %v245
        %v300 = vmul.f32 %v276, %v246
        %v301 = vadd.f32 %v293, %v297
        %v302 = vadd.f32 %v294, %v298
        %v303 = vadd.f32 %v295, %v299
        %v304 = vadd.f32 %v296, %v300
        %vm305 = vcmask 7168
        %306 = vst.msk [vmem:[#allocation2] sm:$0xff] %vm305, %v301
        %307 = vst.msk [vmem:[#allocation2 + $0x8] sm:$0xff] %vm305, %v302
        %308 = vst.msk [vmem:[#allocation2 + $0x10] sm:$0xff] %vm305, %v303
        %309 = vst.msk [vmem:[#allocation2 + $0x18] sm:$0xff] %vm305, %v304
        %p310 = scmp.eq.s32.totalorder %s25, 12
        // Predicated region
        $region41: #{tpu_custom_call.1} parent=27 // pred_check
          %p311 = pneg %p310
        $region42: #{tpu_custom_call.1} parent=27 // pred_check_branch
          %313 = sbr.rel (%p311) target = $region44
        $region43: #{tpu_custom_call.1} parent=27 // pred_region
          %v314 = vld [vmem:[%s195] sm:$0xff]
          %v315 = vld [vmem:[%s195 + $0x8] sm:$0xff]
          %v316 = vld [vmem:[%s195 + $0x10] sm:$0xff]
          %v317 = vld [vmem:[%s195 + $0x18] sm:$0xff]
          %v318 = vld [vmem:[#allocation2] sm:$0xff]
          %v319 = vld [vmem:[#allocation2 + $0x8] sm:$0xff]
          %v320 = vld [vmem:[#allocation2 + $0x10] sm:$0xff]
          %v321 = vld [vmem:[#allocation2 + $0x18] sm:$0xff]
          %323 = vset.pattern.permute.xlu0 0
          %324 = vperm.xlu0 %323, %v318
          %v325 = vpop.permute.xlu0 %324
          %328 = vset.pattern.permute.xlu0 0
          %329 = vperm.xlu0 %328, %v319
          %v330 = vpop.permute.xlu0 %329
          %333 = vset.pattern.permute.xlu0 0
          %334 = vperm.xlu0 %333, %v320
          %v335 = vpop.permute.xlu0 %334
          %338 = vset.pattern.permute.xlu0 0
          %339 = vperm.xlu0 %338, %v321
          %v340 = vpop.permute.xlu0 %339
          %v342 = vsub.f32 %v314, %v325
          %v343 = vsub.f32 %v315, %v330
          %v344 = vsub.f32 %v316, %v335
          %v345 = vsub.f32 %v317, %v340
          %346 = vst [vmem:[%s195] sm:$0xff] %v342
          %347 = vst [vmem:[%s195 + $0x8] sm:$0xff] %v343
          %348 = vst [vmem:[%s195 + $0x10] sm:$0xff] %v344
          %349 = vst [vmem:[%s195 + $0x18] sm:$0xff] %v345
        $region44: #{tpu_custom_call.1} parent=27 // pred_fallthru
          _
        %s350 = sand.u32 %s89, 1
        %s351 = scalar_lea.sflag [#allocation5], %s350
        %s352 = sand.u32 %s89, 1
        %s353 = smul.addr %s352, 32
        %s354 = scalar_lea.vmem [#allocation8], %s353
        // Predicated region
        $region45: #{tpu_custom_call.1} parent=27 // pred_check
          %p355 = pneg %p99
        $region46: #{tpu_custom_call.1} parent=27 // pred_check_branch
          %357 = sbr.rel (%p355) target = $region48
        $region47: #{tpu_custom_call.1} parent=27 // pred_region
          %s358 = smul.u32 4, %s24
          %s359 = ssub.s32 7, %s358
          %p360 = scmp.lt.s32.totalorder %s359, 4
          %s361 = scalar_select %p360, %s359, 4
          %s362 = smul.u32 128, %s361
          %s364 = ssub.s32 512, %s362
          %365 = vsyncadd %s351, %s364
          %p366 = scmp.ne.s32.totalorder 0, %s362
          %s367 = smul.addr %s358, 128
          %s368 = scalar_lea.hbm %s2, %s367
          %s369 = smul.u32 8, %s361
          %s370 = sshll.u32 %s354, 4
          %s371 = int_to_ptr.vmem [resolvable:$true] %s370
          %s372 = sshll.u32 %s369, 4
          %376 = dma.vmem_to_hbm [thread:$0]  (%p366), %s371, %s372, %s368, %s351, 128, 128, 8
        $region48: #{tpu_custom_call.1} parent=27 // pred_fallthru
          _
      $region28: #{tpu_custom_call.1} parent=5 // pred_fallthru
        _
      %p377 = scmp.le.s32.totalorder 2, %s15
      // Predicated region
      $region49: #{tpu_custom_call.1} parent=5 // pred_check
        %p378 = pneg %p377
      $region50: #{tpu_custom_call.1} parent=5 // pred_check_branch
        %380 = sbr.rel (%p378) target = $region52
      $region51: #{tpu_custom_call.1} parent=5 // pred_region
        %s381 = ssub.s32 %s15, 2
        // Predicated region
        $region53: #{tpu_custom_call.1} parent=51 // pred_check
          %p382 = pneg %p105
        $region54: #{tpu_custom_call.1} parent=51 // pred_check_branch
          %384 = sbr.rel (%p382) target = $region56
        $region55: #{tpu_custom_call.1} parent=51 // pred_region
          %s385 = sand.u32 %s90, 1
          %s386 = scalar_lea.sflag [#allocation5], %s385
          %s387 = sand.u32 %s90, 1
          %s388 = smul.addr %s387, 32
          %s389 = scalar_lea.vmem [#allocation8], %s388
          %390 = dma.done %s386, 512
        $region56: #{tpu_custom_call.1} parent=51 // pred_fallthru
          _
      $region52: #{tpu_custom_call.1} parent=5 // pred_fallthru
        _
    $region6: #{tpu_custom_call.1} parent=1 // loop_footer
      %s19 = sadd.s32 1, %s15
    $region7: #{tpu_custom_call.1} parent=1 // loop_footer_branch
      %14 = sbr.rel target = $region3
    $region8: #{tpu_custom_call.1} parent=1 // loop_exit
      _
    %391 = vsyncpa [#allocation4], 1
    %s392 = scalar_lea.sflag [#allocation4], 1
    %393 = vsyncpa %s392, 1
    %394 = vsyncpa [#allocation5], 1
    %s395 = scalar_lea.sflag [#allocation5], 1
    %396 = vsyncpa %s395, 1
    %397 = vsyncpa [#allocation6], 1
    %s398 = scalar_lea.sflag [#allocation6], 1
    %399 = vsyncpa %s398, 1

</llo_original>
